<compile_context>
chip_gen: v5e
topology: v5e:2x2
jax: 0.10.0
libtpu: 0.0.40
codegen_flags: <defaults>
</compile_context>

<pallas_src>
import jax
import jax.numpy as jnp
from jax.experimental import pallas as pl
from jax.experimental.pallas import tpu as pltpu

_LANE = 128
_SUBLANE = 8


def _round_up(x, m):
    return ((x + m - 1) // m) * m


def _encoder_kernel(x_ref, w1_ref, b1_ref, wh_ref, bh_ref, y_ref):
    # hidden = relu(x @ W1 + b1), f32 accumulation on the MXU.
    h = jnp.dot(x_ref[...], w1_ref[...], preferred_element_type=jnp.float32)
    h = jnp.maximum(h + b1_ref[...], 0.0)                       # f32 VPU math
    # Fused heads: [mu | logvar] = h @ [Wmu | Wlv] + [bmu | blv]
    y = jnp.dot(h.astype(wh_ref.dtype), wh_ref[...],
                preferred_element_type=jnp.float32) + bh_ref[...]
    y_ref[...] = y.astype(y_ref.dtype)


def pack_params(params, *, dtype=jnp.float32):
    """One-time weight packing (do NOT call per forward).

    Pads only the (cheap, resident) hidden axis of the weights to 128 lanes and
    fuses the two heads into a single (h_pad, 2*out_dim) matmul operand.
    """
    w1, b1 = params["w1"], params["b1"]
    wmu, bmu = params["wmu"], params["bmu"]
    wlv, blv = params["wlv"], params["blv"]
    inp_dim, hidden = w1.shape
    out_dim = wmu.shape[1]
    h_pad = _round_up(hidden, _LANE)

    w1p = jnp.pad(w1, ((0, 0), (0, h_pad - hidden))).astype(dtype)
    b1p = jnp.pad(b1, (0, h_pad - hidden)).reshape(1, h_pad).astype(jnp.float32)
    whp = jnp.concatenate(
        [jnp.pad(wmu, ((0, h_pad - hidden), (0, 0))),
         jnp.pad(wlv, ((0, h_pad - hidden), (0, 0)))], axis=1).astype(dtype)
    bhp = jnp.concatenate([bmu, blv]).reshape(1, 2 * out_dim).astype(jnp.float32)
    return {"w1p": w1p, "b1p": b1p, "whp": whp, "bhp": bhp,
            "inp_dim": int(inp_dim), "out_dim": int(out_dim), "dtype": dtype}


def nn_encoder_forward(x, packed, *, block_rows=4096, vmem_limit_bytes=32 << 20):
    """x: (B, inp_dim) float32. Returns (mu, logvar), each (B, out_dim)."""
    B, inp_dim = x.shape
    assert inp_dim == packed["inp_dim"]
    out_dim = packed["out_dim"]
    two_out = 2 * out_dim
    w1p, b1p, whp, bhp = packed["w1p"], packed["b1p"], packed["whp"], packed["bhp"]
    h_pad = w1p.shape[1]

    compute_dtype = packed["dtype"]
    xc = x.astype(compute_dtype)

    # --- batch tile selection -------------------------------------------------
    tb = min(block_rows, _round_up(B, _SUBLANE))
    if B >= 2 * _SUBLANE and tb >= B:
        # Keep >=2 grid steps so v7x's two TensorCores both get work
        # (no-op cost on single-TC v5e/v6e: one extra ~0.35us step).
        tb = _round_up(pl.cdiv(B, 2), _SUBLANE)
    # VMEM cap: double-buffered x + y tiles (weights are resident and tiny).
    row_bytes = 2 * (inp_dim * jnp.dtype(compute_dtype).itemsize
                     + two_out * jnp.dtype(x.dtype).itemsize)
    max_rows = max(_SUBLANE, (vmem_limit_bytes // 2) // max(row_bytes, 1))
    tb = min(tb, max(_SUBLANE, (max_rows // _SUBLANE) * _SUBLANE))

    grid = (pl.cdiv(B, tb),)   # partial last block is edge-masked; rows independent

    y = pl.pallas_call(
        _encoder_kernel,
        out_shape=jax.ShapeDtypeStruct((B, two_out), x.dtype),
        grid_spec=pltpu.PrefetchScalarGridSpec(
            num_scalar_prefetch=0,
            grid=grid,
            in_specs=[
                pl.BlockSpec((tb, inp_dim), lambda i: (i, 0)),     # x tile (streamed)
                pl.BlockSpec((inp_dim, h_pad), lambda i: (0, 0)),  # W1 (resident)
                pl.BlockSpec((1, h_pad), lambda i: (0, 0)),        # b1
                pl.BlockSpec((h_pad, two_out), lambda i: (0, 0)),  # [Wmu|Wlv]
                pl.BlockSpec((1, two_out), lambda i: (0, 0)),      # [bmu|blv]
            ],
            out_specs=pl.BlockSpec((tb, two_out), lambda i: (i, 0)),
        ),
        compiler_params=pltpu.CompilerParams(
            dimension_semantics=("parallel",),   # megacore sharding on v7x
            vmem_limit_bytes=vmem_limit_bytes,
        ),
    )(xc, w1p, b1p, whp, bhp)

    mu = y[:, :out_dim]
    logvar = y[:, out_dim:]
    return mu, logvar


def init_params(key, inp_dim, out_dim, hidden=64):
    """Deterministic PyTorch-style init: U(-1/sqrt(fan_in), 1/sqrt(fan_in))."""
    ks = jax.random.split(key, 6)

    def lin(kw, kb, fan_in, fan_out):
        bound = 1.0 / jnp.sqrt(fan_in)
        w = jax.random.uniform(kw, (fan_in, fan_out), jnp.float32, -bound, bound)
        b = jax.random.uniform(kb, (fan_out,), jnp.float32, -bound, bound)
        return w, b

    w1, b1 = lin(ks[0], ks[1], inp_dim, hidden)
    wmu, bmu = lin(ks[2], ks[3], hidden, out_dim)
    wlv, blv = lin(ks[4], ks[5], hidden, out_dim)
    return {"w1": w1, "b1": b1, "wmu": wmu, "bmu": bmu, "wlv": wlv, "blv": blv}


def _reference(x, p):
    h = jnp.maximum(x @ p["w1"] + p["b1"], 0.0)
    return h @ p["wmu"] + p["bmu"], h @ p["wlv"] + p["blv"]


if __name__ == "__main__":
    key = jax.random.PRNGKey(0)
    k_x, k_p = jax.random.split(key)

    B, inp_dim, out_dim = 8, 32, 16
    x = jax.random.normal(k_x, (B, inp_dim), dtype=jnp.float32)
    params = init_params(k_p, inp_dim, out_dim)
    packed = pack_params(params)   # packed once, reused across calls

    mu, logvar = jax.block_until_ready(nn_encoder_forward(x, packed))

    mu_ref, lv_ref = _reference(x, params)
    assert mu.shape == (B, out_dim) and logvar.shape == (B, out_dim)
    assert jnp.allclose(mu, mu_ref, atol=1e-5, rtol=1e-5)
    assert jnp.allclose(logvar, lv_ref, atol=1e-5, rtol=1e-5)

    print("KERNEL_OK")
</pallas_src>

<mosaic_0001>
module attributes {stable_mosaic.version = 11 : i64} {
  func.func @_encoder_kernel(%arg0: i32, %arg1: memref<8x32xf32, #tpu.memory_space<vmem>>, %arg2: memref<32x128xf32, #tpu.memory_space<vmem>>, %arg3: memref<1x128xf32, #tpu.memory_space<vmem>>, %arg4: memref<128x32xf32, #tpu.memory_space<vmem>>, %arg5: memref<1x32xf32, #tpu.memory_space<vmem>>, %arg6: memref<8x32xf32, #tpu.memory_space<vmem>>) attributes {dimension_semantics = [#tpu.dimension_semantics<parallel>], iteration_bounds = array<i64: 1>, scalar_prefetch = 0 : i64, scratch_operands = 0 : i64, tpu.core_type = #tpu.core_type<tc>, window_params = [{transform_indices = @transform_0, window_bounds = array<i64: 8, 32>}, {pipeline_mode = #tpu.pipeline_mode<synchronous>, transform_indices = @transform_1, window_bounds = array<i64: 32, 128>}, {pipeline_mode = #tpu.pipeline_mode<synchronous>, transform_indices = @transform_2, window_bounds = array<i64: 1, 128>}, {pipeline_mode = #tpu.pipeline_mode<synchronous>, transform_indices = @transform_3, window_bounds = array<i64: 128, 32>}, {pipeline_mode = #tpu.pipeline_mode<synchronous>, transform_indices = @transform_4, window_bounds = array<i64: 1, 32>}, {transform_indices = @transform_5, window_bounds = array<i64: 8, 32>}]} {
    %c0 = arith.constant 0 : index
    %c0_0 = arith.constant 0 : index
    %0 = vector.load %arg1[%c0, %c0_0] : memref<8x32xf32, #tpu.memory_space<vmem>>, vector<8x32xf32>
    %c0_1 = arith.constant 0 : index
    %c0_2 = arith.constant 0 : index
    %1 = vector.load %arg2[%c0_1, %c0_2] : memref<32x128xf32, #tpu.memory_space<vmem>>, vector<32x128xf32>
    %cst = arith.constant dense<0.000000e+00> : vector<8x128xf32>
    %2 = tpu.matmul %0, %1, %cst {dimension_numbers = #tpu.dot_dimension_numbers<[1], [0], [0], [1], [0, 0, 1, 1], [], []>} : vector<8x32xf32>, vector<32x128xf32>, vector<8x128xf32> -> vector<8x128xf32>
    %c0_3 = arith.constant 0 : index
    %c0_4 = arith.constant 0 : index
    %3 = vector.load %arg3[%c0_3, %c0_4] : memref<1x128xf32, #tpu.memory_space<vmem>>, vector<1x128xf32>
    %4 = vector.broadcast %3 : vector<1x128xf32> to vector<8x128xf32>
    %5 = arith.addf %2, %4 : vector<8x128xf32>
    %cst_5 = arith.constant 0.000000e+00 : f32
    %6 = vector.broadcast %cst_5 : f32 to vector<8x128xf32>
    %7 = arith.maximumf %5, %6 : vector<8x128xf32>
    %c0_6 = arith.constant 0 : index
    %c0_7 = arith.constant 0 : index
    %8 = vector.load %arg4[%c0_6, %c0_7] : memref<128x32xf32, #tpu.memory_space<vmem>>, vector<128x32xf32>
    %cst_8 = arith.constant dense<0.000000e+00> : vector<8x32xf32>
    %9 = tpu.matmul %7, %8, %cst_8 {dimension_numbers = #tpu.dot_dimension_numbers<[1], [0], [0], [1], [0, 0, 1, 1], [], []>} : vector<8x128xf32>, vector<128x32xf32>, vector<8x32xf32> -> vector<8x32xf32>
    %c0_9 = arith.constant 0 : index
    %c0_10 = arith.constant 0 : index
    %10 = vector.load %arg5[%c0_9, %c0_10] : memref<1x32xf32, #tpu.memory_space<vmem>>, vector<1x32xf32>
    %11 = vector.broadcast %10 : vector<1x32xf32> to vector<8x32xf32>
    %12 = arith.addf %9, %11 : vector<8x32xf32>
    %c0_11 = arith.constant 0 : index
    %c0_12 = arith.constant 0 : index
    %13 = vector.load %arg6[%c0_11, %c0_12] : memref<8x32xf32, #tpu.memory_space<vmem>>, vector<8x32xf32>
    tpu.vector_store %arg6[%c0_11, %c0_12], %12 {strides = array<i32>} : memref<8x32xf32, #tpu.memory_space<vmem>>, vector<8x32xf32>,
    return
  }
  func.func @transform_0(%arg0: i32) -> (i32, i32) {
    %c0_i32 = arith.constant 0 : i32
    %c0_i32_0 = arith.constant 0 : i32
    return %arg0, %c0_i32 : i32, i32
  }
  func.func @transform_1(%arg0: i32) -> (i32, i32) {
    %c0_i32 = arith.constant 0 : i32
    %c0_i32_0 = arith.constant 0 : i32
    %c0_i32_1 = arith.constant 0 : i32
    return %c0_i32, %c0_i32_0 : i32, i32
  }
  func.func @transform_2(%arg0: i32) -> (i32, i32) {
    %c0_i32 = arith.constant 0 : i32
    %c0_i32_0 = arith.constant 0 : i32
    %c0_i32_1 = arith.constant 0 : i32
    return %c0_i32, %c0_i32_0 : i32, i32
  }
  func.func @transform_3(%arg0: i32) -> (i32, i32) {
    %c0_i32 = arith.constant 0 : i32
    %c0_i32_0 = arith.constant 0 : i32
    %c0_i32_1 = arith.constant 0 : i32
    return %c0_i32, %c0_i32_0 : i32, i32
  }
  func.func @transform_4(%arg0: i32) -> (i32, i32) {
    %c0_i32 = arith.constant 0 : i32
    %c0_i32_0 = arith.constant 0 : i32
    %c0_i32_1 = arith.constant 0 : i32
    return %c0_i32, %c0_i32_0 : i32, i32
  }
  func.func @transform_5(%arg0: i32) -> (i32, i32) {
    %c0_i32 = arith.constant 0 : i32
    %c0_i32_0 = arith.constant 0 : i32
    return %arg0, %c0_i32 : i32, i32
  }
}

</mosaic_0001>

<llo_original>
// kernel: tpu_custom_call.1
$region0: #{tpu_custom_call.1}
  #allocation0 [shape = 'u32[]', space=smem, size = 0x4, offset = 0x4, fixed_abs, tag = 'smem constant byte address 0x4 - core index']
  #allocation1 [shape = 'u32[72,128]{1,0:T(1,128)}', space=vmem, size = 0x9000, scoped, tag = 'internal scratch']
  %s0 = inlined_call_operand.vmem [shape: f32[8,32], index: 0, kind: input, shape index: {}]
  %s1 = inlined_call_operand.vmem [shape: f32[32,128], index: 1, kind: input, shape index: {}]
  %s2 = inlined_call_operand.vmem [shape: f32[1,128], index: 2, kind: input, shape index: {}]
  %s3 = inlined_call_operand.vmem [shape: f32[128,32], index: 3, kind: input, shape index: {}]
  %s4 = inlined_call_operand.vmem [shape: f32[1,32], index: 4, kind: input, shape index: {}]
  %s5 = inlined_call_operand.hbm [shape: f32[8,32], index: 5, kind: output, shape index: {}]
  %s6 = sld [smem:[#allocation0]]
  $region30: #{tpu_custom_call.1} parent=0
    _
  %s8 = ssub.s32 1, %s6
  %s9 = scalar_select 0, %s8, %s6
  $region1: #{tpu_custom_call.1} parent=0
    #allocation2 [shape = 'u8[4096]{0}', space=vmem, size = 0x1000, scoped, tag = 'output window, operand 0, single buffered']
    #allocation3 [shape = 's32[1]{0}', space=sflag, size = 0x4, scoped, tag = 'scoped memory for tpu_custom_call.1']
    %10 = vsyncpa [#allocation3], 0
    // Predicated region
    $region2: #{tpu_custom_call.1} parent=1 // pred_check
      _
    $region3: #{tpu_custom_call.1} parent=1 // pred_check_branch
      %12 = sbr.rel (0) target = $region5
    $region4: #{tpu_custom_call.1} parent=1 // pred_region
      _
    $region5: #{tpu_custom_call.1} parent=1 // pred_fallthru
      _
    // Predicated region
    $region6: #{tpu_custom_call.1} parent=1 // pred_check
      _
    $region7: #{tpu_custom_call.1} parent=1 // pred_check_branch
      %14 = sbr.rel (0) target = $region9
    $region8: #{tpu_custom_call.1} parent=1 // pred_region
      _
    $region9: #{tpu_custom_call.1} parent=1 // pred_fallthru
      _
    // Predicated region
    $region10: #{tpu_custom_call.1} parent=1 // pred_check
      _
    $region11: #{tpu_custom_call.1} parent=1 // pred_check_branch
      %16 = sbr.rel (0) target = $region13
    $region12: #{tpu_custom_call.1} parent=1 // pred_region
      _
    $region13: #{tpu_custom_call.1} parent=1 // pred_fallthru
      _
    // Predicated region
    $region14: #{tpu_custom_call.1} parent=1 // pred_check
      _
    $region15: #{tpu_custom_call.1} parent=1 // pred_check_branch
      %18 = sbr.rel (0) target = $region17
    $region16: #{tpu_custom_call.1} parent=1 // pred_region
      _
    $region17: #{tpu_custom_call.1} parent=1 // pred_fallthru
      _
    // Predicated region
    $region18: #{tpu_custom_call.1} parent=1 // pred_check
      _
    $region19: #{tpu_custom_call.1} parent=1 // pred_check_branch
      %20 = sbr.rel (0) target = $region21
    $region20: #{tpu_custom_call.1} parent=1 // pred_region
      _
    $region21: #{tpu_custom_call.1} parent=1 // pred_fallthru
      _
    %v21 = vld [vmem:[%s0] sm:$0xff]
    %v22 = vld [vmem:[%s1] sm:$0xff]
    %v23 = vld [vmem:[%s1 + $0x8] sm:$0xff]
    %v24 = vld [vmem:[%s1 + $0x10] sm:$0xff]
    %v25 = vld [vmem:[%s1 + $0x18] sm:$0xff]
    %v26 = vld [vmem:[%s2] sm:$0x1]
    %v28 = vperm.slane %v26, 0
    %vm30 = vcmask 261120
    %v32 = vsel %vm30, %v21, 0
    %34 = vmatpush.msra.mxu0 0.0
    %35 = vmatpush.msra.mxu0 0.0
    %36 = vmatpush.msra.mxu0 0.0
    %37 = vmatpush.msra.mxu0 0.0
    %38 = vmatpush.msra.mxu0 0.0
    %39 = vmatpush.msra.mxu0 0.0
    %40 = vmatpush.msra.mxu0 0.0
    %41 = vmatpush.msra.mxu0 0.0
    %42 = vmatpush.msra.mxu0 0.0
    %43 = vmatpush.msra.mxu0 0.0
    %44 = vmatpush.msra.mxu0 0.0
    %45 = vmatpush.msra.mxu0 0.0
    %46 = vmatpush.msra.mxu0 %v25
    %47 = vmatpush.msra.mxu0 %v24
    %48 = vmatpush.msra.mxu0 %v23
    %49 = vmatpush.msra.mxu0 %v22
    %50 = vmatmul.f32.gmra.mxu0 %v32
    %v51 = vpop.f32.mrf.mxu0
    %v52 = vadd.f32 %v28, %v51
    %53 = vdwg.mxu0
    %v54 = vmax.f32 %v52, 0.0
    %v55 = vld [vmem:[%s3] sm:$0xff]
    %v56 = vld [vmem:[%s3 + $0x8] sm:$0xff]
    %v57 = vld [vmem:[%s3 + $0x10] sm:$0xff]
    %v58 = vld [vmem:[%s3 + $0x18] sm:$0xff]
    %v59 = vld [vmem:[%s3 + $0x20] sm:$0xff]
    %v60 = vld [vmem:[%s3 + $0x28] sm:$0xff]
    %v61 = vld [vmem:[%s3 + $0x30] sm:$0xff]
    %v62 = vld [vmem:[%s3 + $0x38] sm:$0xff]
    %v63 = vld [vmem:[%s3 + $0x40] sm:$0xff]
    %v64 = vld [vmem:[%s3 + $0x48] sm:$0xff]
    %v65 = vld [vmem:[%s3 + $0x50] sm:$0xff]
    %v66 = vld [vmem:[%s3 + $0x58] sm:$0xff]
    %v67 = vld [vmem:[%s3 + $0x60] sm:$0xff]
    %v68 = vld [vmem:[%s3 + $0x68] sm:$0xff]
    %v69 = vld [vmem:[%s3 + $0x70] sm:$0xff]
    %v70 = vld [vmem:[%s3 + $0x78] sm:$0xff]
    %v71 = vld [vmem:[%s4] sm:$0x1]
    %v73 = vperm.slane %v71, 0
    %75 = vmatpush.msra.mxu0 %v70
    %76 = vmatpush.msra.mxu0 %v69
    %77 = vmatpush.msra.mxu0 %v68
    %78 = vmatpush.msra.mxu0 %v67
    %79 = vmatpush.msra.mxu0 %v66
    %80 = vmatpush.msra.mxu0 %v65
    %81 = vmatpush.msra.mxu0 %v64
    %82 = vmatpush.msra.mxu0 %v63
    %83 = vmatpush.msra.mxu0 %v62
    %84 = vmatpush.msra.mxu0 %v61
    %85 = vmatpush.msra.mxu0 %v60
    %86 = vmatpush.msra.mxu0 %v59
    %87 = vmatpush.msra.mxu0 %v58
    %88 = vmatpush.msra.mxu0 %v57
    %89 = vmatpush.msra.mxu0 %v56
    %90 = vmatpush.msra.mxu0 %v55
    %91 = vmatmul.f32.gmra.mxu0 %v54
    %v92 = vpop.f32.mrf.mxu0
    %v93 = vadd.f32 %v73, %v92
    %94 = vdwg.mxu0
    %95 = vst.msk [vmem:[#allocation2] sm:$0xff] %vm30, %v93
    // Predicated region
    $region22: #{tpu_custom_call.1} parent=1 // pred_check
      _
    $region23: #{tpu_custom_call.1} parent=1 // pred_check_branch
      %97 = sbr.rel (0) target = $region25
    $region24: #{tpu_custom_call.1} parent=1 // pred_region
      %99 = vsyncadd [#allocation3], 0
      %s101 = sshll.u32 [#allocation2], 4
      %s102 = int_to_ptr.vmem [resolvable:$true] %s101
      %s103 = sshll.u32 %s5, 4
      %s104 = int_to_ptr.hbm [resolvable:$true] %s103
      %106 = dma.vmem_to_hbm [thread:$0]  %s102, 128, %s104, [#allocation3]
    $region25: #{tpu_custom_call.1} parent=1 // pred_fallthru
      _
    // Predicated region
    $region26: #{tpu_custom_call.1} parent=1 // pred_check
      _
    $region27: #{tpu_custom_call.1} parent=1 // pred_check_branch
      %108 = sbr.rel (0) target = $region29
    $region28: #{tpu_custom_call.1} parent=1 // pred_region
      %110 = dma.done [#allocation3], 128
    $region29: #{tpu_custom_call.1} parent=1 // pred_fallthru
      _
    %111 = vsyncpa [#allocation3], 1

</llo_original>
